<compile_context>
chip_gen: v7x
topology: tpu7x:2x2x1
jax: 0.10.0
libtpu: 0.0.40
codegen_flags: <defaults>
</compile_context>

<pallas_src>
import jax
import jax.numpy as jnp
from jax.experimental import pallas as pl
from jax.experimental.pallas import tpu as pltpu

# ---------------- hyperparameters (small, consistent with the module) -------
N_ENT, N_REL = 64, 16          # sizes = (N_ENT, N_REL, N_ENT)
EMB_DIM = 40                   # must be divisible by 20
EMB_H = EMB_DIM // 20          # emb_height
C = 4                          # channel multiplier
LAYERS = 2                     # number of cells (identity -> no-ops)
INTERLEAVED = False
INIT_SIZE = 1e-3
BN_EPS = 1e-5
BATCH = 8

N_PAD = ((N_ENT + 127) // 128) * 128   # lane-dense scoring width (128)


# ---------------- Pallas kernel: gather + projection + relu + scoring -------
def _fused_forward_kernel(idx_ref, ent_ref, rel_ref, w_ref, b_ref,
                          scores_ref, lhs_ref, rel_out_ref, rhs_ref):
    # idx_ref: [B, 3] int32      ent_ref: [N_PAD, D]   rel_ref: [N_REL, D]
    # w_ref:   [2*D, D] fused    b_ref:   [1, D] fused
    # scores_ref: [B, N_PAD]     lhs/rel_out/rhs_ref: [B, D]
    idx = idx_ref[...]
    bsz = idx.shape[0]
    n_pad, d = ent_ref.shape
    n_rel = rel_ref.shape[0]

    # One-hot gather of the embedding rows (vectorized, runs on MXU; avoids
    # dynamic indexing and any XLA-side gather + HBM roundtrip).
    iota_e = jax.lax.broadcasted_iota(jnp.int32, (bsz, n_pad), 1)
    iota_r = jax.lax.broadcasted_iota(jnp.int32, (bsz, n_rel), 1)
    oh_lhs = (iota_e == idx[:, 0:1]).astype(jnp.float32)   # [B, N_PAD]
    oh_rel = (iota_r == idx[:, 1:2]).astype(jnp.float32)   # [B, N_REL]
    oh_rhs = (iota_e == idx[:, 2:3]).astype(jnp.float32)   # [B, N_PAD]

    ent = ent_ref[...]
    lhs = jnp.dot(oh_lhs, ent, preferred_element_type=jnp.float32)         # [B, D]
    rel = jnp.dot(oh_rel, rel_ref[...], preferred_element_type=jnp.float32)
    rhs = jnp.dot(oh_rhs, ent, preferred_element_type=jnp.float32)

    lhs_ref[...] = lhs
    rel_out_ref[...] = rel
    rhs_ref[...] = rhs

    # Fused projection: z = [lhs || rel]; z @ W_fused == lhs @ W[:D] + rel @ W[D:]
    # (C-channel collapse, BN2d affine, Linear bias, BN1d all pre-folded).
    h = jnp.dot(lhs, w_ref[0:d, :], preferred_element_type=jnp.float32)
    h = h + jnp.dot(rel, w_ref[d:2 * d, :], preferred_element_type=jnp.float32)
    h = jnp.maximum(h + b_ref[...], 0.0)                                   # ReLU

    # Score against all (zero-padded -> lane-dense) entity embeddings.
    scores_ref[...] = jax.lax.dot_general(
        h, ent, (((1,), (1,)), ((), ())),
        preferred_element_type=jnp.float32)


def fused_forward(idx, ent_pad, rel_emb, w_fused, b_fused):
    B = idx.shape[0]
    vmem = pl.BlockSpec(memory_space=pltpu.MemorySpace.VMEM)
    return pl.pallas_call(
        _fused_forward_kernel,
        out_shape=(
            jax.ShapeDtypeStruct((B, N_PAD), jnp.float32),     # scores (padded)
            jax.ShapeDtypeStruct((B, EMB_DIM), jnp.float32),   # lhs
            jax.ShapeDtypeStruct((B, EMB_DIM), jnp.float32),   # rel
            jax.ShapeDtypeStruct((B, EMB_DIM), jnp.float32),   # rhs
        ),
        in_specs=[vmem] * 5,
        out_specs=(vmem,) * 4,
    )(idx, ent_pad, rel_emb, w_fused, b_fused)


# ---------------- deterministic parameter construction ----------------------
def make_params(key):
    ks = jax.random.split(key, 8)
    F = EMB_DIM * 2 * C
    return {
        "ent_emb": INIT_SIZE * jax.random.normal(ks[0], (N_ENT, EMB_DIM), jnp.float32),
        "rel_emb": INIT_SIZE * jax.random.normal(ks[1], (N_REL, EMB_DIM), jnp.float32),
        # input BatchNorm2d(1), eval mode
        "bn2_gamma": 1.0 + 0.1 * jax.random.normal(ks[2], (1,), jnp.float32),
        "bn2_beta": 0.05 * jax.random.normal(ks[3], (1,), jnp.float32),
        "bn2_rm": jnp.array([0.0], jnp.float32),
        "bn2_rv": jnp.array([1.0], jnp.float32),
        # projection Linear(F, EMB_DIM): stored as [F, D] (i.e. W.T)
        "proj_w": (1.0 / jnp.sqrt(F)) * jax.random.normal(ks[4], (F, EMB_DIM), jnp.float32),
        "proj_b": 0.01 * jax.random.normal(ks[5], (EMB_DIM,), jnp.float32),
        # output BatchNorm1d(EMB_DIM), eval mode
        "bn1_gamma": 1.0 + 0.1 * jax.random.normal(ks[6], (EMB_DIM,), jnp.float32),
        "bn1_beta": 0.05 * jax.random.normal(ks[7], (EMB_DIM,), jnp.float32),
        "bn1_rm": jnp.zeros((EMB_DIM,), jnp.float32),
        "bn1_rv": jnp.ones((EMB_DIM,), jnp.float32),
    }


# ---------------- one-time parameter folding (done outside the kernel) ------
def fold_params(params):
    D2 = 2 * EMB_DIM
    # Collapse the C identical channel copies of the flattened activation
    # into the weight (valid because the cells are identity / skip_connect).
    w_eff = params["proj_w"].reshape(C, D2, EMB_DIM).sum(axis=0)        # [2D, D]
    # Reorder rows so they line up with z = [lhs || rel].
    if INTERLEAVED:
        w3 = w_eff.reshape(2 * EMB_H, 20, EMB_DIM)
        w_lhs = w3[0::2].reshape(EMB_H * 20, EMB_DIM)
        w_rel = w3[1::2].reshape(EMB_H * 20, EMB_DIM)
    else:
        w_lhs = w_eff[:EMB_DIM]
        w_rel = w_eff[EMB_DIM:]
    w_lr = jnp.concatenate([w_lhs, w_rel], axis=0)                      # [2D, D]

    # Fold BN2d (eval) affine, Linear bias and BN1d (eval) into W / bias.
    alpha = params["bn2_gamma"][0] / jnp.sqrt(params["bn2_rv"][0] + BN_EPS)
    beta_off = params["bn2_beta"][0] - params["bn2_rm"][0] * alpha
    scale = params["bn1_gamma"] / jnp.sqrt(params["bn1_rv"] + BN_EPS)
    shift = params["bn1_beta"] - params["bn1_rm"] * scale

    w_fused = (alpha * w_lr) * scale[None, :]                           # [2D, D]
    b_fused = (beta_off * w_lr.sum(axis=0) + params["proj_b"]) * scale + shift

    # Zero-pad the entity table to 128 rows -> lane-dense scores store.
    ent_pad = jnp.pad(params["ent_emb"], ((0, N_PAD - N_ENT), (0, 0)))

    return {
        "ent_pad": ent_pad.astype(jnp.float32),
        "rel_emb": params["rel_emb"].astype(jnp.float32),
        "w_fused": w_fused.astype(jnp.float32),
        "b_fused": b_fused.reshape(1, EMB_DIM).astype(jnp.float32),
    }


# ---------------- forward: everything hot runs in one Pallas kernel ---------
def network_kbc_forward(folded, x):
    B = x.shape[0]
    # input_drop / output_drop are identity in eval mode.
    # cells: identity (skip_connect) chain -> folded into the weights above.
    scores_pad, lhs, rel, rhs = fused_forward(
        x.astype(jnp.int32),
        folded["ent_pad"],
        folded["rel_emb"],
        folded["w_fused"],
        folded["b_fused"],
    )
    scores = scores_pad[:, :N_ENT]
    lhs4 = lhs.reshape(B, 1, EMB_H, 20)
    rel4 = rel.reshape(B, 1, EMB_H, 20)
    return scores, (lhs4, rel4, rhs)


forward_jit = jax.jit(network_kbc_forward)


# ---------------- pure-JAX reference (unfolded) for sanity -------------------
def reference_forward(params, x):
    lhs = params["ent_emb"][x[:, 0]]
    rel = params["rel_emb"][x[:, 1]]
    rhs = params["ent_emb"][x[:, 2]]
    B = x.shape[0]
    lhs4 = lhs.reshape(B, 1, EMB_H, 20)
    rel4 = rel.reshape(B, 1, EMB_H, 20)
    if INTERLEAVED:
        s0 = jnp.concatenate([lhs4, rel4], axis=3).reshape(B, 1, 2 * EMB_H, 20)
    else:
        s0 = jnp.concatenate([lhs4, rel4], axis=2)
    a = params["bn2_gamma"][0] / jnp.sqrt(params["bn2_rv"][0] + BN_EPS)
    s0 = (s0 - params["bn2_rm"][0]) * a + params["bn2_beta"][0]
    s0 = jnp.broadcast_to(s0, (B, C, 2 * EMB_H, 20)).reshape(B, -1)
    h = s0 @ params["proj_w"] + params["proj_b"]
    scale = params["bn1_gamma"] / jnp.sqrt(params["bn1_rv"] + BN_EPS)
    shift = params["bn1_beta"] - params["bn1_rm"] * scale
    h = jnp.maximum(h * scale + shift, 0.0)
    return h @ params["ent_emb"].T, lhs, rel, rhs


if __name__ == "__main__":
    key = jax.random.PRNGKey(0)
    kp, k0, k1, k2 = jax.random.split(key, 4)
    params = make_params(kp)
    folded = fold_params(params)   # parameter-only algebra, done once

    # queries: (lhs_id, rel_id, rhs_id)
    x = jnp.stack(
        [
            jax.random.randint(k0, (BATCH,), 0, N_ENT),
            jax.random.randint(k1, (BATCH,), 0, N_REL),
            jax.random.randint(k2, (BATCH,), 0, N_ENT),
        ],
        axis=1,
    ).astype(jnp.int32)

    scores, (lhs4, rel4, rhs) = forward_jit(folded, x)
    scores = jax.block_until_ready(scores)

    ref_scores, ref_lhs, ref_rel, ref_rhs = reference_forward(params, x)

    assert scores.shape == (BATCH, N_ENT)
    assert lhs4.shape == (BATCH, 1, EMB_H, 20)
    assert rel4.shape == (BATCH, 1, EMB_H, 20)
    assert rhs.shape == (BATCH, EMB_DIM)
    assert jnp.allclose(scores, ref_scores, atol=1e-5, rtol=1e-4)
    assert jnp.allclose(lhs4, ref_lhs.reshape(BATCH, 1, EMB_H, 20), atol=1e-6)
    assert jnp.allclose(rel4, ref_rel.reshape(BATCH, 1, EMB_H, 20), atol=1e-6)
    assert jnp.allclose(rhs, ref_rhs, atol=1e-6)

    print("KERNEL_OK")
</pallas_src>

<mosaic_0001>
module attributes {stable_mosaic.version = 11 : i64} {
  func.func @_fused_forward_kernel(%arg0: memref<8x3xi32, #tpu.memory_space<vmem>>, %arg1: memref<128x40xf32, #tpu.memory_space<vmem>>, %arg2: memref<16x40xf32, #tpu.memory_space<vmem>>, %arg3: memref<80x40xf32, #tpu.memory_space<vmem>>, %arg4: memref<1x40xf32, #tpu.memory_space<vmem>>, %arg5: memref<8x128xf32, #tpu.memory_space<vmem>>, %arg6: memref<8x40xf32, #tpu.memory_space<vmem>>, %arg7: memref<8x40xf32, #tpu.memory_space<vmem>>, %arg8: memref<8x40xf32, #tpu.memory_space<vmem>>) attributes {dimension_semantics = [], scalar_prefetch = 0 : i64, scratch_operands = 0 : i64, tpu.core_type = #tpu.core_type<tc>} {
    %c0 = arith.constant 0 : index
    %c0_0 = arith.constant 0 : index
    %0 = vector.load %arg0[%c0, %c0_0] : memref<8x3xi32, #tpu.memory_space<vmem>>, vector<8x3xi32>
    %1 = tpu.iota {dimensions = array<i32: 1>} : vector<8x128xi32>
    %2 = tpu.iota {dimensions = array<i32: 1>} : vector<8x16xi32>
    %3 = vector.extract_strided_slice %0 {offsets = [0, 0], sizes = [8, 1], strides = [1, 1]} : vector<8x3xi32> to vector<8x1xi32>
    %4 = vector.broadcast %3 : vector<8x1xi32> to vector<8x128xi32>
    %5 = arith.cmpi eq, %1, %4 : vector<8x128xi32>
    %6 = arith.extui %5 : vector<8x128xi1> to vector<8x128xi32>
    %7 = arith.sitofp %6 : vector<8x128xi32> to vector<8x128xf32>
    %8 = vector.extract_strided_slice %0 {offsets = [0, 1], sizes = [8, 1], strides = [1, 1]} : vector<8x3xi32> to vector<8x1xi32>
    %9 = vector.broadcast %8 : vector<8x1xi32> to vector<8x16xi32>
    %10 = arith.cmpi eq, %2, %9 : vector<8x16xi32>
    %11 = arith.extui %10 : vector<8x16xi1> to vector<8x16xi32>
    %12 = arith.sitofp %11 : vector<8x16xi32> to vector<8x16xf32>
    %13 = vector.extract_strided_slice %0 {offsets = [0, 2], sizes = [8, 1], strides = [1, 1]} : vector<8x3xi32> to vector<8x1xi32>
    %14 = vector.broadcast %13 : vector<8x1xi32> to vector<8x128xi32>
    %15 = arith.cmpi eq, %1, %14 : vector<8x128xi32>
    %16 = arith.extui %15 : vector<8x128xi1> to vector<8x128xi32>
    %17 = arith.sitofp %16 : vector<8x128xi32> to vector<8x128xf32>
    %c0_1 = arith.constant 0 : index
    %c0_2 = arith.constant 0 : index
    %18 = vector.load %arg1[%c0_1, %c0_2] : memref<128x40xf32, #tpu.memory_space<vmem>>, vector<128x40xf32>
    %cst = arith.constant dense<0.000000e+00> : vector<8x40xf32>
    %19 = tpu.matmul %7, %18, %cst {dimension_numbers = #tpu.dot_dimension_numbers<[1], [0], [0], [1], [0, 0, 1, 1], [], []>} : vector<8x128xf32>, vector<128x40xf32>, vector<8x40xf32> -> vector<8x40xf32>
    %c0_3 = arith.constant 0 : index
    %c0_4 = arith.constant 0 : index
    %20 = vector.load %arg2[%c0_3, %c0_4] : memref<16x40xf32, #tpu.memory_space<vmem>>, vector<16x40xf32>
    %cst_5 = arith.constant dense<0.000000e+00> : vector<8x40xf32>
    %21 = tpu.matmul %12, %20, %cst_5 {dimension_numbers = #tpu.dot_dimension_numbers<[1], [0], [0], [1], [0, 0, 1, 1], [], []>} : vector<8x16xf32>, vector<16x40xf32>, vector<8x40xf32> -> vector<8x40xf32>
    %cst_6 = arith.constant dense<0.000000e+00> : vector<8x40xf32>
    %22 = tpu.matmul %17, %18, %cst_6 {dimension_numbers = #tpu.dot_dimension_numbers<[1], [0], [0], [1], [0, 0, 1, 1], [], []>} : vector<8x128xf32>, vector<128x40xf32>, vector<8x40xf32> -> vector<8x40xf32>
    %c0_7 = arith.constant 0 : index
    %c0_8 = arith.constant 0 : index
    %23 = vector.load %arg6[%c0_7, %c0_8] : memref<8x40xf32, #tpu.memory_space<vmem>>, vector<8x40xf32>
    tpu.vector_store %arg6[%c0_7, %c0_8], %19 {strides = array<i32>} : memref<8x40xf32, #tpu.memory_space<vmem>>, vector<8x40xf32>,
    %c0_9 = arith.constant 0 : index
    %c0_10 = arith.constant 0 : index
    %24 = vector.load %arg7[%c0_9, %c0_10] : memref<8x40xf32, #tpu.memory_space<vmem>>, vector<8x40xf32>
    tpu.vector_store %arg7[%c0_9, %c0_10], %21 {strides = array<i32>} : memref<8x40xf32, #tpu.memory_space<vmem>>, vector<8x40xf32>,
    %c0_11 = arith.constant 0 : index
    %c0_12 = arith.constant 0 : index
    %25 = vector.load %arg8[%c0_11, %c0_12] : memref<8x40xf32, #tpu.memory_space<vmem>>, vector<8x40xf32>
    tpu.vector_store %arg8[%c0_11, %c0_12], %22 {strides = array<i32>} : memref<8x40xf32, #tpu.memory_space<vmem>>, vector<8x40xf32>,
    %c0_13 = arith.constant 0 : index
    %c0_14 = arith.constant 0 : index
    %26 = vector.load %arg3[%c0_13, %c0_14] : memref<80x40xf32, #tpu.memory_space<vmem>>, vector<40x40xf32>
    %cst_15 = arith.constant dense<0.000000e+00> : vector<8x40xf32>
    %27 = tpu.matmul %19, %26, %cst_15 {dimension_numbers = #tpu.dot_dimension_numbers<[1], [0], [0], [1], [0, 0, 1, 1], [], []>} : vector<8x40xf32>, vector<40x40xf32>, vector<8x40xf32> -> vector<8x40xf32>
    %c40 = arith.constant 40 : index
    %c0_16 = arith.constant 0 : index
    %28 = vector.load %arg3[%c40, %c0_16] : memref<80x40xf32, #tpu.memory_space<vmem>>, vector<40x40xf32>
    %cst_17 = arith.constant dense<0.000000e+00> : vector<8x40xf32>
    %29 = tpu.matmul %21, %28, %cst_17 {dimension_numbers = #tpu.dot_dimension_numbers<[1], [0], [0], [1], [0, 0, 1, 1], [], []>} : vector<8x40xf32>, vector<40x40xf32>, vector<8x40xf32> -> vector<8x40xf32>
    %30 = arith.addf %27, %29 : vector<8x40xf32>
    %c0_18 = arith.constant 0 : index
    %c0_19 = arith.constant 0 : index
    %31 = vector.load %arg4[%c0_18, %c0_19] : memref<1x40xf32, #tpu.memory_space<vmem>>, vector<1x40xf32>
    %32 = vector.broadcast %31 : vector<1x40xf32> to vector<8x40xf32>
    %33 = arith.addf %30, %32 : vector<8x40xf32>
    %cst_20 = arith.constant 0.000000e+00 : f32
    %34 = vector.broadcast %cst_20 : f32 to vector<8x40xf32>
    %35 = arith.maximumf %33, %34 : vector<8x40xf32>
    %cst_21 = arith.constant dense<0.000000e+00> : vector<8x128xf32>
    %36 = tpu.matmul %35, %18, %cst_21 {dimension_numbers = #tpu.dot_dimension_numbers<[1], [1], [0], [0], [0, 0, 1, 0], [], []>} : vector<8x40xf32>, vector<128x40xf32>, vector<8x128xf32> -> vector<8x128xf32>
    %c0_22 = arith.constant 0 : index
    %c0_23 = arith.constant 0 : index
    %37 = vector.load %arg5[%c0_22, %c0_23] : memref<8x128xf32, #tpu.memory_space<vmem>>, vector<8x128xf32>
    tpu.vector_store %arg5[%c0_22, %c0_23], %36 {strides = array<i32>} : memref<8x128xf32, #tpu.memory_space<vmem>>, vector<8x128xf32>,
    return
  }
}

</mosaic_0001>

<llo_original>
// kernel: network_kbc_forward.1
$region0: #{network_kbc_forward.1}
  #allocation0 [shape = 'u32[]', space=smem, size = 0x4, offset = 0x4, fixed_abs, tag = 'smem constant byte address 0x4 - core index']
  #allocation1 [shape = 'u32[144,128]{1,0:T(1,128)}', space=vmem, size = 0x12000, scoped, tag = 'internal scratch']
  %s0 = inlined_call_operand.vmem [shape: s32[8,3], index: 0, kind: input, shape index: {}]
  %s1 = inlined_call_operand.vmem [shape: f32[128,40], index: 1, kind: input, shape index: {}]
  %s2 = inlined_call_operand.vmem [shape: f32[16,40], index: 2, kind: input, shape index: {}]
  %s3 = inlined_call_operand.vmem [shape: f32[80,40], index: 3, kind: input, shape index: {}]
  %s4 = inlined_call_operand.vmem [shape: f32[1,40], index: 4, kind: input, shape index: {}]
  %s5 = inlined_call_operand.hbm [shape: f32[8,128], index: 5, kind: output, shape index: {0}]
  %s6 = inlined_call_operand.vmem [shape: f32[8,40], index: 6, kind: output, shape index: {1}]
  %s7 = inlined_call_operand.vmem [shape: f32[8,40], index: 7, kind: output, shape index: {2}]
  %s8 = inlined_call_operand.hbm [shape: f32[8,40], index: 8, kind: output, shape index: {3}]
  %9 = xla_tuple %s5, %s6, %s7, %s8
  %s10 = sld [smem:[#allocation0]]
  $region54: #{network_kbc_forward.1} parent=0
    _
  %s12 = ssub.s32 1, %s10
  %s13 = scalar_select 0, %s12, %s10
  $region1: #{network_kbc_forward.1} parent=0
    #allocation2 [shape = 'u8[4096]{0}', space=vmem, size = 0x1000, scoped, tag = 'output window, operand 0, single buffered']
    #allocation3 [shape = 's32[1]{0}', space=sflag, size = 0x4, scoped, tag = 'scoped memory for network_kbc_forward.1']
    #allocation4 [shape = 'u8[4096]{0}', space=vmem, size = 0x1000, scoped, tag = 'output window, operand 3, single buffered']
    #allocation5 [shape = 's32[1]{0}', space=sflag, size = 0x4, scoped, tag = 'scoped memory for network_kbc_forward.1']
    %14 = vsyncpa [#allocation3], 0
    %15 = vsyncpa [#allocation5], 0
    // Predicated region
    $region2: #{network_kbc_forward.1} parent=1 // pred_check
      _
    $region3: #{network_kbc_forward.1} parent=1 // pred_check_branch
      %17 = sbr.rel (0) target = $region5
    $region4: #{network_kbc_forward.1} parent=1 // pred_region
      _
    $region5: #{network_kbc_forward.1} parent=1 // pred_fallthru
      _
    // Predicated region
    $region6: #{network_kbc_forward.1} parent=1 // pred_check
      _
    $region7: #{network_kbc_forward.1} parent=1 // pred_check_branch
      %19 = sbr.rel (0) target = $region9
    $region8: #{network_kbc_forward.1} parent=1 // pred_region
      _
    $region9: #{network_kbc_forward.1} parent=1 // pred_fallthru
      _
    // Predicated region
    $region10: #{network_kbc_forward.1} parent=1 // pred_check
      _
    $region11: #{network_kbc_forward.1} parent=1 // pred_check_branch
      %21 = sbr.rel (0) target = $region13
    $region12: #{network_kbc_forward.1} parent=1 // pred_region
      _
    $region13: #{network_kbc_forward.1} parent=1 // pred_fallthru
      _
    // Predicated region
    $region14: #{network_kbc_forward.1} parent=1 // pred_check
      _
    $region15: #{network_kbc_forward.1} parent=1 // pred_check_branch
      %23 = sbr.rel (0) target = $region17
    $region16: #{network_kbc_forward.1} parent=1 // pred_region
      _
    $region17: #{network_kbc_forward.1} parent=1 // pred_fallthru
      _
    // Predicated region
    $region18: #{network_kbc_forward.1} parent=1 // pred_check
      _
    $region19: #{network_kbc_forward.1} parent=1 // pred_check_branch
      %25 = sbr.rel (0) target = $region21
    $region20: #{network_kbc_forward.1} parent=1 // pred_region
      _
    $region21: #{network_kbc_forward.1} parent=1 // pred_fallthru
      _
    %v26 = vld [vmem:[%s0] sm:$0xff]
    %v27 = vlaneseq
    %v28 = vand.u32 %v27, 127
    %29 = vset.pattern.permute.xlu0 0
    %30 = vperm.xlu0 %29, %v26
    %v31 = vpop.permute.xlu0 %30
    %vm32 = vcmp.eq.s32.totalorder %v28, %v31
    %v33 = vsel %vm32, 1, 0
    %v34 = vcvt.s32.f32 %v33
    %35 = vset.pattern.permute.xlu0 1
    %36 = vperm.xlu0 %35, %v26
    %v37 = vpop.permute.xlu0 %36
    %vm38 = vcmp.eq.s32.totalorder %v28, %v37
    %v39 = vsel %vm38, 1, 0
    %v40 = vcvt.s32.f32 %v39
    %41 = vset.pattern.permute.xlu0 2
    %42 = vperm.xlu0 %41, %v26
    %v43 = vpop.permute.xlu0 %42
    %vm44 = vcmp.eq.s32.totalorder %v28, %v43
    %v45 = vsel %vm44, 1, 0
    %v46 = vcvt.s32.f32 %v45
    %v47 = vld [vmem:[%s1] sm:$0xff]
    %v48 = vld [vmem:[%s1 + $0x8] sm:$0xff]
    %v49 = vld [vmem:[%s1 + $0x10] sm:$0xff]
    %v50 = vld [vmem:[%s1 + $0x18] sm:$0xff]
    %v51 = vld [vmem:[%s1 + $0x20] sm:$0xff]
    %v52 = vld [vmem:[%s1 + $0x28] sm:$0xff]
    %v53 = vld [vmem:[%s1 + $0x30] sm:$0xff]
    %v54 = vld [vmem:[%s1 + $0x38] sm:$0xff]
    %v55 = vld [vmem:[%s1 + $0x40] sm:$0xff]
    %v56 = vld [vmem:[%s1 + $0x48] sm:$0xff]
    %v57 = vld [vmem:[%s1 + $0x50] sm:$0xff]
    %v58 = vld [vmem:[%s1 + $0x58] sm:$0xff]
    %v59 = vld [vmem:[%s1 + $0x60] sm:$0xff]
    %v60 = vld [vmem:[%s1 + $0x68] sm:$0xff]
    %v61 = vld [vmem:[%s1 + $0x70] sm:$0xff]
    %v62 = vld [vmem:[%s1 + $0x78] sm:$0xff]
    %63 = vmatprep.subr.mxu0 0.0
    %64 = vmatpush1.msra.mxu0 %v47
    %65 = vmatprep.subr.mxu0 0.0
    %66 = vmatpush1.msra.mxu0 %v48
    %67 = vmatprep.subr.mxu0 0.0
    %68 = vmatpush1.msra.mxu0 %v49
    %69 = vmatprep.subr.mxu0 0.0
    %70 = vmatpush1.msra.mxu0 %v50
    %71 = vmatprep.subr.mxu0 0.0
    %72 = vmatpush1.msra.mxu0 %v51
    %73 = vmatprep.subr.mxu0 0.0
    %74 = vmatpush1.msra.mxu0 %v52
    %75 = vmatprep.subr.mxu0 0.0
    %76 = vmatpush1.msra.mxu0 %v53
    %77 = vmatprep.subr.mxu0 0.0
    %78 = vmatpush1.msra.mxu0 %v54
    %79 = vmatprep.subr.mxu0 0.0
    %80 = vmatpush1.msra.mxu0 %v55
    %81 = vmatprep.subr.mxu0 0.0
    %82 = vmatpush1.msra.mxu0 %v56
    %83 = vmatprep.subr.mxu0 0.0
    %84 = vmatpush1.msra.mxu0 %v57
    %85 = vmatprep.subr.mxu0 0.0
    %86 = vmatpush1.msra.mxu0 %v58
    %87 = vmatprep.subr.mxu0 0.0
    %88 = vmatpush1.msra.mxu0 %v59
    %89 = vmatprep.subr.mxu0 0.0
    %90 = vmatpush1.msra.mxu0 %v60
    %91 = vmatprep.subr.mxu0 0.0
    %92 = vmatpush1.msra.mxu0 %v61
    %93 = vmatprep.subr.mxu0 0.0
    %94 = vmatpush1.msra.mxu0 %v62
    %95 = vmatprep.subr.mxu0 0.0
    %96 = vmatpush1.msra.mxu0 0.0
    %97 = vmatprep.subr.mxu0 0.0
    %98 = vmatpush1.msra.mxu0 0.0
    %99 = vmatprep.subr.mxu0 0.0
    %100 = vmatpush1.msra.mxu0 0.0
    %101 = vmatprep.subr.mxu0 0.0
    %102 = vmatpush1.msra.mxu0 0.0
    %103 = vmatprep.subr.mxu0 0.0
    %104 = vmatpush1.msra.mxu0 0.0
    %105 = vmatprep.subr.mxu0 0.0
    %106 = vmatpush1.msra.mxu0 0.0
    %107 = vmatprep.subr.mxu0 0.0
    %108 = vmatpush1.msra.mxu0 0.0
    %109 = vmatprep.subr.mxu0 0.0
    %110 = vmatpush1.msra.mxu0 0.0
    %111 = vmatprep.subr.mxu0 0.0
    %112 = vmatpush1.msra.mxu0 0.0
    %113 = vmatprep.subr.mxu0 0.0
    %114 = vmatpush1.msra.mxu0 0.0
    %115 = vmatprep.subr.mxu0 0.0
    %116 = vmatpush1.msra.mxu0 0.0
    %117 = vmatprep.subr.mxu0 0.0
    %118 = vmatpush1.msra.mxu0 0.0
    %119 = vmatprep.subr.mxu0 0.0
    %120 = vmatpush1.msra.mxu0 0.0
    %121 = vmatprep.subr.mxu0 0.0
    %122 = vmatpush1.msra.mxu0 0.0
    %123 = vmatprep.subr.mxu0 0.0
    %124 = vmatpush1.msra.mxu0 0.0
    %125 = vmatprep.subr.mxu0 0.0
    %126 = vmatpush1.msra.mxu0 0.0
    %127 = vmatprep.mubr.f32.mxu0 0.0
    %128 = vmatmul.mubr.f32.gmra.mrb[0].mxu0 %v34
    %v129 = vpop.f32.mrb[0].mxu0
    %v130 = vadd.f32 0.0, %v129
    %v131 = vpop.f32.mrb[0].mxu0
    %132 = vdwg.mxu0
    %v133 = vld [vmem:[%s2] sm:$0xff]
    %v134 = vld [vmem:[%s2 + $0x8] sm:$0xff]
    %vm135 = vcmask 130048
    %v137 = vsel %vm135, %v40, 0
    %139 = vmatprep.subr.mxu0 0.0
    %140 = vmatpush1.msra.mxu0 %v133
    %141 = vmatprep.subr.mxu0 0.0
    %142 = vmatpush1.msra.mxu0 %v134
    %143 = vmatprep.subr.mxu0 0.0
    %144 = vmatpush1.msra.mxu0 0.0
    %145 = vmatprep.subr.mxu0 0.0
    %146 = vmatpush1.msra.mxu0 0.0
    %147 = vmatprep.subr.mxu0 0.0
    %148 = vmatpush1.msra.mxu0 0.0
    %149 = vmatprep.subr.mxu0 0.0
    %150 = vmatpush1.msra.mxu0 0.0
    %151 = vmatprep.subr.mxu0 0.0
    %152 = vmatpush1.msra.mxu0 0.0
    %153 = vmatprep.subr.mxu0 0.0
    %154 = vmatpush1.msra.mxu0 0.0
    %155 = vmatprep.subr.mxu0 0.0
    %156 = vmatpush1.msra.mxu0 0.0
    %157 = vmatprep.subr.mxu0 0.0
    %158 = vmatpush1.msra.mxu0 0.0
    %159 = vmatprep.subr.mxu0 0.0
    %160 = vmatpush1.msra.mxu0 0.0
    %161 = vmatprep.subr.mxu0 0.0
    %162 = vmatpush1.msra.mxu0 0.0
    %163 = vmatprep.subr.mxu0 0.0
    %164 = vmatpush1.msra.mxu0 0.0
    %165 = vmatprep.subr.mxu0 0.0
    %166 = vmatpush1.msra.mxu0 0.0
    %167 = vmatprep.subr.mxu0 0.0
    %168 = vmatpush1.msra.mxu0 0.0
    %169 = vmatprep.subr.mxu0 0.0
    %170 = vmatpush1.msra.mxu0 0.0
    %171 = vmatprep.subr.mxu0 0.0
    %172 = vmatpush1.msra.mxu0 0.0
    %173 = vmatprep.subr.mxu0 0.0
    %174 = vmatpush1.msra.mxu0 0.0
    %175 = vmatprep.subr.mxu0 0.0
    %176 = vmatpush1.msra.mxu0 0.0
    %177 = vmatprep.subr.mxu0 0.0
    %178 = vmatpush1.msra.mxu0 0.0
    %179 = vmatprep.subr.mxu0 0.0
    %180 = vmatpush1.msra.mxu0 0.0
    %181 = vmatprep.subr.mxu0 0.0
    %182 = vmatpush1.msra.mxu0 0.0
    %183 = vmatprep.subr.mxu0 0.0
    %184 = vmatpush1.msra.mxu0 0.0
    %185 = vmatprep.subr.mxu0 0.0
    %186 = vmatpush1.msra.mxu0 0.0
    %187 = vmatprep.subr.mxu0 0.0
    %188 = vmatpush1.msra.mxu0 0.0
    %189 = vmatprep.subr.mxu0 0.0
    %190 = vmatpush1.msra.mxu0 0.0
    %191 = vmatprep.subr.mxu0 0.0
    %192 = vmatpush1.msra.mxu0 0.0
    %193 = vmatprep.subr.mxu0 0.0
    %194 = vmatpush1.msra.mxu0 0.0
    %195 = vmatprep.subr.mxu0 0.0
    %196 = vmatpush1.msra.mxu0 0.0
    %197 = vmatprep.subr.mxu0 0.0
    %198 = vmatpush1.msra.mxu0 0.0
    %199 = vmatprep.subr.mxu0 0.0
    %200 = vmatpush1.msra.mxu0 0.0
    %201 = vmatprep.subr.mxu0 0.0
    %202 = vmatpush1.msra.mxu0 0.0
    %203 = vmatprep.mubr.f32.mxu0 0.0
    %204 = vmatmul.mubr.f32.gmra.mrb[0].mxu0 %v137
    %v205 = vpop.f32.mrb[0].mxu0
    %v206 = vadd.f32 0.0, %v205
    %v207 = vpop.f32.mrb[0].mxu0
    %208 = vdwg.mxu0
    %209 = vmatprep.subr.mxu0 0.0
    %210 = vmatpush1.msra.mxu0 %v47
    %211 = vmatprep.subr.mxu0 0.0
    %212 = vmatpush1.msra.mxu0 %v48
    %213 = vmatprep.subr.mxu0 0.0
    %214 = vmatpush1.msra.mxu0 %v49
    %215 = vmatprep.subr.mxu0 0.0
    %216 = vmatpush1.msra.mxu0 %v50
    %217 = vmatprep.subr.mxu0 0.0
    %218 = vmatpush1.msra.mxu0 %v51
    %219 = vmatprep.subr.mxu0 0.0
    %220 = vmatpush1.msra.mxu0 %v52
    %221 = vmatprep.subr.mxu0 0.0
    %222 = vmatpush1.msra.mxu0 %v53
    %223 = vmatprep.subr.mxu0 0.0
    %224 = vmatpush1.msra.mxu0 %v54
    %225 = vmatprep.subr.mxu0 0.0
    %226 = vmatpush1.msra.mxu0 %v55
    %227 = vmatprep.subr.mxu0 0.0
    %228 = vmatpush1.msra.mxu0 %v56
    %229 = vmatprep.subr.mxu0 0.0
    %230 = vmatpush1.msra.mxu0 %v57
    %231 = vmatprep.subr.mxu0 0.0
    %232 = vmatpush1.msra.mxu0 %v58
    %233 = vmatprep.subr.mxu0 0.0
    %234 = vmatpush1.msra.mxu0 %v59
    %235 = vmatprep.subr.mxu0 0.0
    %236 = vmatpush1.msra.mxu0 %v60
    %237 = vmatprep.subr.mxu0 0.0
    %238 = vmatpush1.msra.mxu0 %v61
    %239 = vmatprep.subr.mxu0 0.0
    %240 = vmatpush1.msra.mxu0 %v62
    %241 = vmatprep.subr.mxu0 0.0
    %242 = vmatpush1.msra.mxu0 0.0
    %243 = vmatprep.subr.mxu0 0.0
    %244 = vmatpush1.msra.mxu0 0.0
    %245 = vmatprep.subr.mxu0 0.0
    %246 = vmatpush1.msra.mxu0 0.0
    %247 = vmatprep.subr.mxu0 0.0
    %248 = vmatpush1.msra.mxu0 0.0
    %249 = vmatprep.subr.mxu0 0.0
    %250 = vmatpush1.msra.mxu0 0.0
    %251 = vmatprep.subr.mxu0 0.0
    %252 = vmatpush1.msra.mxu0 0.0
    %253 = vmatprep.subr.mxu0 0.0
    %254 = vmatpush1.msra.mxu0 0.0
    %255 = vmatprep.subr.mxu0 0.0
    %256 = vmatpush1.msra.mxu0 0.0
    %257 = vmatprep.subr.mxu0 0.0
    %258 = vmatpush1.msra.mxu0 0.0
    %259 = vmatprep.subr.mxu0 0.0
    %260 = vmatpush1.msra.mxu0 0.0
    %261 = vmatprep.subr.mxu0 0.0
    %262 = vmatpush1.msra.mxu0 0.0
    %263 = vmatprep.subr.mxu0 0.0
    %264 = vmatpush1.msra.mxu0 0.0
    %265 = vmatprep.subr.mxu0 0.0
    %266 = vmatpush1.msra.mxu0 0.0
    %267 = vmatprep.subr.mxu0 0.0
    %268 = vmatpush1.msra.mxu0 0.0
    %269 = vmatprep.subr.mxu0 0.0
    %270 = vmatpush1.msra.mxu0 0.0
    %271 = vmatprep.subr.mxu0 0.0
    %272 = vmatpush1.msra.mxu0 0.0
    %273 = vmatprep.mubr.f32.mxu0 0.0
    %274 = vmatmul.mubr.f32.gmra.mrb[0].mxu0 %v46
    %v275 = vpop.f32.mrb[0].mxu0
    %v276 = vadd.f32 0.0, %v275
    %v277 = vpop.f32.mrb[0].mxu0
    %278 = vdwg.mxu0
    %vm279 = vcmask 326656
    %280 = vst.msk [vmem:[%s6] sm:$0xff] %vm279, %v130
    %281 = vst.msk [vmem:[%s7] sm:$0xff] %vm279, %v206
    %282 = vst.msk [vmem:[#allocation4] sm:$0xff] %vm279, %v276
    %v283 = vld [vmem:[%s3] sm:$0xff]
    %v284 = vld [vmem:[%s3 + $0x8] sm:$0xff]
    %v285 = vld [vmem:[%s3 + $0x10] sm:$0xff]
    %v286 = vld [vmem:[%s3 + $0x18] sm:$0xff]
    %v287 = vld [vmem:[%s3 + $0x20] sm:$0xff]
    %v288 = vld [vmem:[%s3 + $0x28] sm:$0xff]
    %v289 = vld [vmem:[%s3 + $0x30] sm:$0xff]
    %v290 = vld [vmem:[%s3 + $0x38] sm:$0xff]
    %v291 = vld [vmem:[%s3 + $0x40] sm:$0xff]
    %v292 = vld [vmem:[%s3 + $0x48] sm:$0xff]
    %v294 = vsel %vm279, %v206, 0
    %296 = vmatprep.subr.mxu0 0.0
    %297 = vmatpush1.msra.mxu0 %v288
    %298 = vmatprep.subr.mxu0 0.0
    %299 = vmatpush1.msra.mxu0 %v289
    %300 = vmatprep.subr.mxu0 0.0
    %301 = vmatpush1.msra.mxu0 %v290
    %302 = vmatprep.subr.mxu0 0.0
    %303 = vmatpush1.msra.mxu0 %v291
    %304 = vmatprep.subr.mxu0 0.0
    %305 = vmatpush1.msra.mxu0 %v292
    %306 = vmatprep.subr.mxu0 0.0
    %307 = vmatpush1.msra.mxu0 0.0
    %308 = vmatprep.subr.mxu0 0.0
    %309 = vmatpush1.msra.mxu0 0.0
    %310 = vmatprep.subr.mxu0 0.0
    %311 = vmatpush1.msra.mxu0 0.0
    %312 = vmatprep.subr.mxu0 0.0
    %313 = vmatpush1.msra.mxu0 0.0
    %314 = vmatprep.subr.mxu0 0.0
    %315 = vmatpush1.msra.mxu0 0.0
    %316 = vmatprep.subr.mxu0 0.0
    %317 = vmatpush1.msra.mxu0 0.0
    %318 = vmatprep.subr.mxu0 0.0
    %319 = vmatpush1.msra.mxu0 0.0
    %320 = vmatprep.subr.mxu0 0.0
    %321 = vmatpush1.msra.mxu0 0.0
    %322 = vmatprep.subr.mxu0 0.0
    %323 = vmatpush1.msra.mxu0 0.0
    %324 = vmatprep.subr.mxu0 0.0
    %325 = vmatpush1.msra.mxu0 0.0
    %326 = vmatprep.subr.mxu0 0.0
    %327 = vmatpush1.msra.mxu0 0.0
    %328 = vmatprep.subr.mxu0 0.0
    %329 = vmatpush1.msra.mxu0 0.0
    %330 = vmatprep.subr.mxu0 0.0
    %331 = vmatpush1.msra.mxu0 0.0
    %332 = vmatprep.subr.mxu0 0.0
    %333 = vmatpush1.msra.mxu0 0.0
    %334 = vmatprep.subr.mxu0 0.0
    %335 = vmatpush1.msra.mxu0 0.0
    %336 = vmatprep.subr.mxu0 0.0
    %337 = vmatpush1.msra.mxu0 0.0
    %338 = vmatprep.subr.mxu0 0.0
    %339 = vmatpush1.msra.mxu0 0.0
    %340 = vmatprep.subr.mxu0 0.0
    %341 = vmatpush1.msra.mxu0 0.0
    %342 = vmatprep.subr.mxu0 0.0
    %343 = vmatpush1.msra.mxu0 0.0
    %344 = vmatprep.subr.mxu0 0.0
    %345 = vmatpush1.msra.mxu0 0.0
    %346 = vmatprep.subr.mxu0 0.0
    %347 = vmatpush1.msra.mxu0 0.0
    %348 = vmatprep.subr.mxu0 0.0
    %349 = vmatpush1.msra.mxu0 0.0
    %350 = vmatprep.subr.mxu0 0.0
    %351 = vmatpush1.msra.mxu0 0.0
    %352 = vmatprep.subr.mxu0 0.0
    %353 = vmatpush1.msra.mxu0 0.0
    %354 = vmatprep.subr.mxu0 0.0
    %355 = vmatpush1.msra.mxu0 0.0
    %356 = vmatprep.subr.mxu0 0.0
    %357 = vmatpush1.msra.mxu0 0.0
    %358 = vmatprep.subr.mxu0 0.0
    %359 = vmatpush1.msra.mxu0 0.0
    %360 = vmatprep.mubr.f32.mxu0 0.0
    %361 = vmatmul.mubr.f32.gmra.mrb[0].mxu0 %v294
    %v362 = vpop.f32.mrb[0].mxu0
    %v363 = vadd.f32 0.0, %v362
    %v364 = vpop.f32.mrb[0].mxu0
    %365 = vdwg.mxu0
    %v367 = vsel %vm279, %v130, 0
    %369 = vmatprep.subr.mxu0 0.0
    %370 = vmatpush1.msra.mxu0 %v283
    %371 = vmatprep.subr.mxu0 0.0
    %372 = vmatpush1.msra.mxu0 %v284
    %373 = vmatprep.subr.mxu0 0.0
    %374 = vmatpush1.msra.mxu0 %v285
    %375 = vmatprep.subr.mxu0 0.0
    %376 = vmatpush1.msra.mxu0 %v286
    %377 = vmatprep.subr.mxu0 0.0
    %378 = vmatpush1.msra.mxu0 %v287
    %379 = vmatprep.subr.mxu0 0.0
    %380 = vmatpush1.msra.mxu0 0.0
    %381 = vmatprep.subr.mxu0 0.0
    %382 = vmatpush1.msra.mxu0 0.0
    %383 = vmatprep.subr.mxu0 0.0
    %384 = vmatpush1.msra.mxu0 0.0
    %385 = vmatprep.subr.mxu0 0.0
    %386 = vmatpush1.msra.mxu0 0.0
    %387 = vmatprep.subr.mxu0 0.0
    %388 = vmatpush1.msra.mxu0 0.0
    %389 = vmatprep.subr.mxu0 0.0
    %390 = vmatpush1.msra.mxu0 0.0
    %391 = vmatprep.subr.mxu0 0.0
    %392 = vmatpush1.msra.mxu0 0.0
    %393 = vmatprep.subr.mxu0 0.0
    %394 = vmatpush1.msra.mxu0 0.0
    %395 = vmatprep.subr.mxu0 0.0
    %396 = vmatpush1.msra.mxu0 0.0
    %397 = vmatprep.subr.mxu0 0.0
    %398 = vmatpush1.msra.mxu0 0.0
    %399 = vmatprep.subr.mxu0 0.0
    %400 = vmatpush1.msra.mxu0 0.0
    %401 = vmatprep.subr.mxu0 0.0
    %402 = vmatpush1.msra.mxu0 0.0
    %403 = vmatprep.subr.mxu0 0.0
    %404 = vmatpush1.msra.mxu0 0.0
    %405 = vmatprep.subr.mxu0 0.0
    %406 = vmatpush1.msra.mxu0 0.0
    %407 = vmatprep.subr.mxu0 0.0
    %408 = vmatpush1.msra.mxu0 0.0
    %409 = vmatprep.subr.mxu0 0.0
    %410 = vmatpush1.msra.mxu0 0.0
    %411 = vmatprep.subr.mxu0 0.0
    %412 = vmatpush1.msra.mxu0 0.0
    %413 = vmatprep.subr.mxu0 0.0
    %414 = vmatpush1.msra.mxu0 0.0
    %415 = vmatprep.subr.mxu0 0.0
    %416 = vmatpush1.msra.mxu0 0.0
    %417 = vmatprep.subr.mxu0 0.0
    %418 = vmatpush1.msra.mxu0 0.0
    %419 = vmatprep.subr.mxu0 0.0
    %420 = vmatpush1.msra.mxu0 0.0
    %421 = vmatprep.subr.mxu0 0.0
    %422 = vmatpush1.msra.mxu0 0.0
    %423 = vmatprep.subr.mxu0 0.0
    %424 = vmatpush1.msra.mxu0 0.0
    %425 = vmatprep.subr.mxu0 0.0
    %426 = vmatpush1.msra.mxu0 0.0
    %427 = vmatprep.subr.mxu0 0.0
    %428 = vmatpush1.msra.mxu0 0.0
    %429 = vmatprep.subr.mxu0 0.0
    %430 = vmatpush1.msra.mxu0 0.0
    %431 = vmatprep.subr.mxu0 0.0
    %432 = vmatpush1.msra.mxu0 0.0
    %433 = vmatprep.mubr.f32.mxu0 0.0
    %434 = vmatmul.mubr.f32.gmra.mrb[0].mxu0 %v367
    %v435 = vpop.f32.mrb[0].mxu0
    %v436 = vadd.f32 %v363, %v435
    %v437 = vpop.f32.mrb[0].mxu0
    %438 = vdwg.mxu0
    %v439 = vld [vmem:[%s4] sm:$0x1]
    %v441 = vlaneseq
    %v442 = vshrl.u32 %v441, 7
    %v443 = vsub.s32 0, %v442
    %v444 = vrot.slane %v439, %v443
    %v446 = vadd.f32 %v436, %v444
    %v447 = vmax.f32 %v446, 0.0
    %v449 = vsel %vm279, %v447, 0
    %v452 = vsel %vm279, %v47, 0
    %v455 = vsel %vm279, %v48, 0
    %v458 = vsel %vm279, %v49, 0
    %v461 = vsel %vm279, %v50, 0
    %v464 = vsel %vm279, %v51, 0
    %v467 = vsel %vm279, %v52, 0
    %v470 = vsel %vm279, %v53, 0
    %v473 = vsel %vm279, %v54, 0
    %v476 = vsel %vm279, %v55, 0
    %v479 = vsel %vm279, %v56, 0
    %v482 = vsel %vm279, %v57, 0
    %v485 = vsel %vm279, %v58, 0
    %v488 = vsel %vm279, %v59, 0
    %v491 = vsel %vm279, %v60, 0
    %v494 = vsel %vm279, %v61, 0
    %v497 = vsel %vm279, %v62, 0
    %499 = vmatprep.subr.mxu0 0.0
    %500 = vmatpush1.xpose.msra.mxu0 %v452
    %501 = vmatprep.subr.mxu0 0.0
    %502 = vmatpush1.xpose.msra.mxu0 %v455
    %503 = vmatprep.subr.mxu0 0.0
    %504 = vmatpush1.xpose.msra.mxu0 %v458
    %505 = vmatprep.subr.mxu0 0.0
    %506 = vmatpush1.xpose.msra.mxu0 %v461
    %507 = vmatprep.subr.mxu0 0.0
    %508 = vmatpush1.xpose.msra.mxu0 %v464
    %509 = vmatprep.subr.mxu0 0.0
    %510 = vmatpush1.xpose.msra.mxu0 %v467
    %511 = vmatprep.subr.mxu0 0.0
    %512 = vmatpush1.xpose.msra.mxu0 %v470
    %513 = vmatprep.subr.mxu0 0.0
    %514 = vmatpush1.xpose.msra.mxu0 %v473
    %515 = vmatprep.subr.mxu0 0.0
    %516 = vmatpush1.xpose.msra.mxu0 %v476
    %517 = vmatprep.subr.mxu0 0.0
    %518 = vmatpush1.xpose.msra.mxu0 %v479
    %519 = vmatprep.subr.mxu0 0.0
    %520 = vmatpush1.xpose.msra.mxu0 %v482
    %521 = vmatprep.subr.mxu0 0.0
    %522 = vmatpush1.xpose.msra.mxu0 %v485
    %523 = vmatprep.subr.mxu0 0.0
    %524 = vmatpush1.xpose.msra.mxu0 %v488
    %525 = vmatprep.subr.mxu0 0.0
    %526 = vmatpush1.xpose.msra.mxu0 %v491
    %527 = vmatprep.subr.mxu0 0.0
    %528 = vmatpush1.xpose.msra.mxu0 %v494
    %529 = vmatprep.subr.mxu0 0.0
    %530 = vmatpush1.xpose.msra.mxu0 %v497
    %531 = vmatprep.subr.mxu0 0.0
    %532 = vmatpush1.xpose.msra.mxu0 0.0
    %533 = vmatprep.subr.mxu0 0.0
    %534 = vmatpush1.xpose.msra.mxu0 0.0
    %535 = vmatprep.subr.mxu0 0.0
    %536 = vmatpush1.xpose.msra.mxu0 0.0
    %537 = vmatprep.subr.mxu0 0.0
    %538 = vmatpush1.xpose.msra.mxu0 0.0
    %539 = vmatprep.subr.mxu0 0.0
    %540 = vmatpush1.xpose.msra.mxu0 0.0
    %541 = vmatprep.subr.mxu0 0.0
    %542 = vmatpush1.xpose.msra.mxu0 0.0
    %543 = vmatprep.subr.mxu0 0.0
    %544 = vmatpush1.xpose.msra.mxu0 0.0
    %545 = vmatprep.subr.mxu0 0.0
    %546 = vmatpush1.xpose.msra.mxu0 0.0
    %547 = vmatprep.subr.mxu0 0.0
    %548 = vmatpush1.xpose.msra.mxu0 0.0
    %549 = vmatprep.subr.mxu0 0.0
    %550 = vmatpush1.xpose.msra.mxu0 0.0
    %551 = vmatprep.subr.mxu0 0.0
    %552 = vmatpush1.xpose.msra.mxu0 0.0
    %553 = vmatprep.subr.mxu0 0.0
    %554 = vmatpush1.xpose.msra.mxu0 0.0
    %555 = vmatprep.subr.mxu0 0.0
    %556 = vmatpush1.xpose.msra.mxu0 0.0
    %557 = vmatprep.subr.mxu0 0.0
    %558 = vmatpush1.xpose.msra.mxu0 0.0
    %559 = vmatprep.subr.mxu0 0.0
    %560 = vmatpush1.xpose.msra.mxu0 0.0
    %561 = vmatprep.subr.mxu0 0.0
    %562 = vmatpush1.xpose.msra.mxu0 0.0
    %563 = vmatprep.mubr.f32.mxu0 0.0
    %564 = vmatmul.mubr.f32.gmra.mrb[0].mxu0 %v449
    %v565 = vpop.f32.mrb[0].mxu0
    %v566 = vadd.f32 0.0, %v565
    %v567 = vpop.f32.mrb[0].mxu0
    %568 = vdwg.mxu0
    %569 = vst [vmem:[#allocation2] sm:$0xff] %v566
    // Predicated region
    $region22: #{network_kbc_forward.1} parent=1 // pred_check
      _
    $region23: #{network_kbc_forward.1} parent=1 // pred_check_branch
      %571 = sbr.rel (0) target = $region25
    $region24: #{network_kbc_forward.1} parent=1 // pred_region
      %s573 = ssub.s32 128, 128
      %574 = vsyncadd [#allocation3], %s573
      %s576 = sshll.u32 [#allocation2], 4
      %s577 = int_to_ptr.vmem [resolvable:$true] %s576
      %579 = dma.vmem_to_hbm [thread:$0]  %s577, 128, %s5, [#allocation3]
    $region25: #{network_kbc_forward.1} parent=1 // pred_fallthru
      _
    // Predicated region
    $region26: #{network_kbc_forward.1} parent=1 // pred_check
      _
    $region27: #{network_kbc_forward.1} parent=1 // pred_check_branch
      %581 = sbr.rel (0) target = $region29
    $region28: #{network_kbc_forward.1} parent=1 // pred_region
      _
    $region29: #{network_kbc_forward.1} parent=1 // pred_fallthru
      _
    // Predicated region
    $region30: #{network_kbc_forward.1} parent=1 // pred_check
      _
    $region31: #{network_kbc_forward.1} parent=1 // pred_check_branch
      %583 = sbr.rel (0) target = $region33
    $region32: #{network_kbc_forward.1} parent=1 // pred_region
      _
    $region33: #{network_kbc_forward.1} parent=1 // pred_fallthru
      _
    // Predicated region
    $region34: #{network_kbc_forward.1} parent=1 // pred_check
      _
    $region35: #{network_kbc_forward.1} parent=1 // pred_check_branch
      %585 = sbr.rel (0) target = $region37
    $region36: #{network_kbc_forward.1} parent=1 // pred_region
      %s587 = ssub.s32 128, 128
      %588 = vsyncadd [#allocation5], %s587
      %s590 = sshll.u32 [#allocation4], 4
      %s591 = int_to_ptr.vmem [resolvable:$true] %s590
      %593 = dma.vmem_to_hbm [thread:$0]  %s591, 128, %s8, [#allocation5]
    $region37: #{network_kbc_forward.1} parent=1 // pred_fallthru
      _
    // Predicated region
    $region38: #{network_kbc_forward.1} parent=1 // pred_check
      _
    $region39: #{network_kbc_forward.1} parent=1 // pred_check_branch
      %595 = sbr.rel (0) target = $region41
    $region40: #{network_kbc_forward.1} parent=1 // pred_region
      %596 = dma.done [#allocation3], 128
    $region41: #{network_kbc_forward.1} parent=1 // pred_fallthru
      _
    // Predicated region
    $region42: #{network_kbc_forward.1} parent=1 // pred_check
      _
    $region43: #{network_kbc_forward.1} parent=1 // pred_check_branch
      %598 = sbr.rel (0) target = $region45
    $region44: #{network_kbc_forward.1} parent=1 // pred_region
      _
    $region45: #{network_kbc_forward.1} parent=1 // pred_fallthru
      _
    // Predicated region
    $region46: #{network_kbc_forward.1} parent=1 // pred_check
      _
    $region47: #{network_kbc_forward.1} parent=1 // pred_check_branch
      %600 = sbr.rel (0) target = $region49
    $region48: #{network_kbc_forward.1} parent=1 // pred_region
      _
    $region49: #{network_kbc_forward.1} parent=1 // pred_fallthru
      _
    // Predicated region
    $region50: #{network_kbc_forward.1} parent=1 // pred_check
      _
    $region51: #{network_kbc_forward.1} parent=1 // pred_check_branch
      %602 = sbr.rel (0) target = $region53
    $region52: #{network_kbc_forward.1} parent=1 // pred_region
      %603 = dma.done [#allocation5], 128
    $region53: #{network_kbc_forward.1} parent=1 // pred_fallthru
      _
    %604 = vsyncpa [#allocation3], 1
    %605 = vsyncpa [#allocation5], 1

</llo_original>
